<compile_context>
chip_gen: v5e
topology: v5e:2x2
jax: 0.10.0
libtpu: 0.0.40
codegen_flags: <defaults>
</compile_context>

<pallas_src>
import jax
import jax.numpy as jnp
from jax import lax
from jax.experimental import pallas as pl
from jax.experimental.pallas import tpu as pltpu

# model hyper-parameters implied by the PyTorch module
C_TIME = 40      # conv_time / conv_spat out channels
K_TIME = 25      # conv_time kernel height
K_SPAT = 5       # conv_spat kernel width (== input W so the W axis collapses to 1)
HIDDEN = 10      # LSTM hidden size
N_CLS = 2        # classifier outputs
POOL_K = 25
POOL_S = 5
BN_EPS = 1e-5


# --------------------------------------------------------------------------- #
# Pallas kernel: the whole forward pass in one launch
# --------------------------------------------------------------------------- #
def conv_lstm_kernel(p_ref, wcomb_ref, bcomb_ref, pool_ref, wih_ref, whh_ref,
                     bg_ref, wc_ref, bc_ref, out_ref):
    # Stage 1: conv_time + conv_spat + BatchNorm(eval) folded into ONE matmul.
    #   patches [B*Tout, 125] (bf16) @ Wcomb [125, 40] (bf16) -> f32 [B*Tout, 40]
    conv = (jnp.dot(p_ref[...], wcomb_ref[...],
                    preferred_element_type=jnp.float32) + bcomb_ref[...])

    # AvgPool2d((25,1), stride (5,1)) as one block-diagonal (time-major) matmul:
    #   pool [S*B, B*Tout] @ conv [B*Tout, 40] -> feat [S*B, 40]
    feat = jnp.dot(pool_ref[...], conv, preferred_element_type=jnp.float32)

    # LSTM input projection hoisted out of the recurrence, all 4 gates fused:
    #   feat [S*B, 40] @ Wih [40, 4H] + b -> xg [S*B, 4H]  (time-major rows)
    xg = (jnp.dot(feat, wih_ref[...], preferred_element_type=jnp.float32)
          + bg_ref[...])

    whh = whh_ref[...]                       # [H, 4H] (gates fused)
    n_b = out_ref.shape[0]
    n_h = whh.shape[0]
    n_s = xg.shape[0] // n_b

    h = jnp.zeros((n_b, n_h), jnp.float32)
    c = jnp.zeros((n_b, n_h), jnp.float32)
    for t in range(n_s):                     # S = 6, statically unrolled
        # xg rows [t*B, (t+1)*B) are x_t @ Wih + bias for all batch elements.
        gates = xg[t * n_b:(t + 1) * n_b, :] + jnp.dot(
            h, whh, preferred_element_type=jnp.float32)            # [B, 4H]
        i = jax.nn.sigmoid(gates[:, 0 * n_h:1 * n_h])
        f = jax.nn.sigmoid(gates[:, 1 * n_h:2 * n_h])
        g = jnp.tanh(gates[:, 2 * n_h:3 * n_h])
        o = jax.nn.sigmoid(gates[:, 3 * n_h:4 * n_h])
        c = f * c + i * g
        h = o * jnp.tanh(c)

    # classifier: Linear(10, 2)
    out_ref[...] = (jnp.dot(h, wc_ref[...], preferred_element_type=jnp.float32)
                    + bc_ref[...])


# --------------------------------------------------------------------------- #
# Wrapper: im2col (contraction dim last), weight folding, pallas_call plumbing
# --------------------------------------------------------------------------- #
def conv_lstm_forward(x, p):
    # x: [B, 1, T, W]  (NCHW, in-channels == 1)
    B, _, T, W = x.shape
    xs = x[:, 0]                               # [B, T, W]
    t_out = T - K_TIME + 1
    S = (t_out - POOL_K) // POOL_S + 1

    # im2col with the contraction dim LAST: patches[b*Tout + t, w*K + k] = x[b, t+k, w]
    cols = jnp.stack([xs[:, k:k + t_out, :] for k in range(K_TIME)], axis=-1)  # [B,Tout,W,K]
    patches = cols.reshape(B * t_out, W * K_TIME)                              # [200, 125]

    # Fold conv_time + conv_spat + BatchNorm(eval) into one weight / bias.
    wt2d = p['conv_time_w'][:, 0, :, 0]                        # [C, K]
    ws3d = p['conv_spat_w'][:, :, 0, :]                        # [Cout, Cin, W]
    scale = p['bn_gamma'] / jnp.sqrt(p['bn_var'] + BN_EPS)     # [C]
    shift = p['bn_beta'] - p['bn_mean'] * scale                # [C]
    wcomb = (jnp.einsum('ck,dcw->wkd', wt2d, ws3d)
             * scale[None, None, :]).reshape(W * K_TIME, C_TIME)               # [125, 40]
    bcomb = (jnp.einsum('c,dcw->d', p['conv_time_b'], ws3d) * scale + shift)[None, :]

    # bf16 MXU inputs for the big conv matmul (f32 accumulation in-kernel);
    # all elementwise / recurrent math stays in f32 (v5e VPU/EUP have no bf16).
    patches = patches.astype(jnp.bfloat16)
    wcomb = wcomb.astype(jnp.bfloat16)

    # Block-diagonal, time-major pooling matrix: row (s, b) x col (b, t).
    rows = jnp.arange(S * B)
    s_i = rows // B
    b_i = rows % B
    cols_i = jnp.arange(B * t_out)
    bc_i = cols_i // t_out
    t_i = cols_i % t_out
    pool_big = (((bc_i[None, :] == b_i[:, None])
                 & (t_i[None, :] >= s_i[:, None] * POOL_S)
                 & (t_i[None, :] < s_i[:, None] * POOL_S + POOL_K))
                .astype(jnp.float32) / POOL_K)                                 # [S*B, B*Tout]

    # LSTM + classifier params (PyTorch gate order i,f,g,o; all gates fused).
    wih = p['lstm_w_ih'].T                                                     # [C, 4H]
    whh = p['lstm_w_hh'].T                                                     # [H, 4H]
    bg = (p['lstm_b_ih'] + p['lstm_b_hh'])[None, :]                            # [1, 4H]
    wc = p['cls_w'].T                                                          # [H, 2]
    bc = p['cls_b'][None, :]                                                   # [1, 2]

    vmem = pl.BlockSpec(memory_space=pltpu.MemorySpace.VMEM)
    return pl.pallas_call(
        conv_lstm_kernel,
        out_shape=jax.ShapeDtypeStruct((B, N_CLS), jnp.float32),
        in_specs=[vmem] * 9,
        out_specs=vmem,
    )(patches, wcomb, bcomb, pool_big, wih, whh, bg, wc, bc)


# --------------------------------------------------------------------------- #
# Deterministic parameter init (synthetic; shapes from the module's __init__)
# --------------------------------------------------------------------------- #
def init_params(key):
    ks = jax.random.split(key, 13)
    n = lambda k, shape, s=0.1: s * jax.random.normal(k, shape, jnp.float32)
    return {
        'conv_time_w': n(ks[0], (C_TIME, 1, K_TIME, 1)),
        'conv_time_b': n(ks[1], (C_TIME,)),
        'conv_spat_w': n(ks[2], (C_TIME, C_TIME, 1, K_SPAT), 0.05),
        'bn_gamma': 1.0 + n(ks[3], (C_TIME,)),
        'bn_beta': n(ks[4], (C_TIME,)),
        'bn_mean': n(ks[5], (C_TIME,)),
        'bn_var': jax.random.uniform(ks[6], (C_TIME,), jnp.float32, 0.5, 1.5),
        'lstm_w_ih': n(ks[7], (4 * HIDDEN, C_TIME)),
        'lstm_w_hh': n(ks[8], (4 * HIDDEN, HIDDEN)),
        'lstm_b_ih': n(ks[9], (4 * HIDDEN,)),
        'lstm_b_hh': n(ks[10], (4 * HIDDEN,), 0.05),
        'cls_w': n(ks[11], (N_CLS, HIDDEN)),
        'cls_b': n(ks[12], (N_CLS,)),
    }


# --------------------------------------------------------------------------- #
# Pure-JAX reference (independent formulation, used only for a sanity check)
# --------------------------------------------------------------------------- #
def reference_forward(x, p):
    hp = lax.Precision.HIGHEST
    h = lax.conv_general_dilated(x, p['conv_time_w'], (1, 1), 'VALID',
                                 dimension_numbers=('NCHW', 'OIHW', 'NCHW'),
                                 precision=hp)
    h = h + p['conv_time_b'][None, :, None, None]
    h = lax.conv_general_dilated(h, p['conv_spat_w'], (1, 1), 'VALID',
                                 dimension_numbers=('NCHW', 'OIHW', 'NCHW'),
                                 precision=hp)
    scale = p['bn_gamma'] / jnp.sqrt(p['bn_var'] + BN_EPS)
    h = ((h - p['bn_mean'][None, :, None, None]) * scale[None, :, None, None]
         + p['bn_beta'][None, :, None, None])
    h = lax.reduce_window(h, 0.0, lax.add, (1, 1, POOL_K, 1), (1, 1, POOL_S, 1),
                          'VALID') / POOL_K
    h = jnp.transpose(jnp.squeeze(h, axis=3), (0, 2, 1))          # [B, S, C]
    n_b, n_s, _ = h.shape
    hh = jnp.zeros((n_b, HIDDEN), jnp.float32)
    cc = jnp.zeros((n_b, HIDDEN), jnp.float32)
    for t in range(n_s):
        gates = (jnp.dot(h[:, t, :], p['lstm_w_ih'].T, precision=hp)
                 + jnp.dot(hh, p['lstm_w_hh'].T, precision=hp)
                 + p['lstm_b_ih'] + p['lstm_b_hh'])
        i, f, g, o = jnp.split(gates, 4, axis=1)
        cc = jax.nn.sigmoid(f) * cc + jax.nn.sigmoid(i) * jnp.tanh(g)
        hh = jax.nn.sigmoid(o) * jnp.tanh(cc)
    return jnp.dot(hh, p['cls_w'].T, precision=hp) + p['cls_b']


# --------------------------------------------------------------------------- #
if __name__ == "__main__":
    B, T, W_IN = 4, 74, 5        # small shapes: Tout = 50, pooled seq length S = 6
    x = jax.random.normal(jax.random.PRNGKey(0), (B, 1, T, W_IN), jnp.float32)
    params = init_params(jax.random.PRNGKey(1))

    out = jax.jit(conv_lstm_forward)(x, params)
    out = jax.block_until_ready(out)

    assert out.shape == (B, N_CLS), out.shape
    assert bool(jnp.all(jnp.isfinite(out)))

    ref = reference_forward(x, params)
    err = float(jnp.max(jnp.abs(out - ref)))
    # tolerance accounts for bf16 MXU inputs on the folded conv matmul
    assert err < 1e-2, f"mismatch vs reference: {err}"

    print("KERNEL_OK")
</pallas_src>

<mosaic_0001>
module attributes {stable_mosaic.version = 11 : i64} {
  func.func @conv_lstm_kernel(%arg0: memref<200x125xbf16, #tpu.memory_space<vmem>>, %arg1: memref<125x40xbf16, #tpu.memory_space<vmem>>, %arg2: memref<1x40xf32, #tpu.memory_space<vmem>>, %arg3: memref<24x200xf32, #tpu.memory_space<vmem>>, %arg4: memref<40x40xf32, #tpu.memory_space<vmem>>, %arg5: memref<10x40xf32, #tpu.memory_space<vmem>>, %arg6: memref<1x40xf32, #tpu.memory_space<vmem>>, %arg7: memref<10x2xf32, #tpu.memory_space<vmem>>, %arg8: memref<1x2xf32, #tpu.memory_space<vmem>>, %arg9: memref<4x2xf32, #tpu.memory_space<vmem>>) attributes {dimension_semantics = [], scalar_prefetch = 0 : i64, scratch_operands = 0 : i64, tpu.core_type = #tpu.core_type<tc>} {
    %c0 = arith.constant 0 : index
    %c0_0 = arith.constant 0 : index
    %0 = vector.load %arg0[%c0, %c0_0] : memref<200x125xbf16, #tpu.memory_space<vmem>>, vector<200x125xbf16>
    %c0_1 = arith.constant 0 : index
    %c0_2 = arith.constant 0 : index
    %1 = vector.load %arg1[%c0_1, %c0_2] : memref<125x40xbf16, #tpu.memory_space<vmem>>, vector<125x40xbf16>
    %cst = arith.constant dense<0.000000e+00> : vector<200x40xf32>
    %2 = tpu.matmul %0, %1, %cst {dimension_numbers = #tpu.dot_dimension_numbers<[1], [0], [0], [1], [0, 0, 1, 1], [], []>} : vector<200x125xbf16>, vector<125x40xbf16>, vector<200x40xf32> -> vector<200x40xf32>
    %c0_3 = arith.constant 0 : index
    %c0_4 = arith.constant 0 : index
    %3 = vector.load %arg2[%c0_3, %c0_4] : memref<1x40xf32, #tpu.memory_space<vmem>>, vector<1x40xf32>
    %4 = vector.broadcast %3 : vector<1x40xf32> to vector<200x40xf32>
    %5 = arith.addf %2, %4 : vector<200x40xf32>
    %c0_5 = arith.constant 0 : index
    %c0_6 = arith.constant 0 : index
    %6 = vector.load %arg3[%c0_5, %c0_6] : memref<24x200xf32, #tpu.memory_space<vmem>>, vector<24x200xf32>
    %cst_7 = arith.constant dense<0.000000e+00> : vector<24x40xf32>
    %7 = tpu.matmul %6, %5, %cst_7 {dimension_numbers = #tpu.dot_dimension_numbers<[1], [0], [0], [1], [0, 0, 1, 1], [], []>} : vector<24x200xf32>, vector<200x40xf32>, vector<24x40xf32> -> vector<24x40xf32>
    %c0_8 = arith.constant 0 : index
    %c0_9 = arith.constant 0 : index
    %8 = vector.load %arg4[%c0_8, %c0_9] : memref<40x40xf32, #tpu.memory_space<vmem>>, vector<40x40xf32>
    %cst_10 = arith.constant dense<0.000000e+00> : vector<24x40xf32>
    %9 = tpu.matmul %7, %8, %cst_10 {dimension_numbers = #tpu.dot_dimension_numbers<[1], [0], [0], [1], [0, 0, 1, 1], [], []>} : vector<24x40xf32>, vector<40x40xf32>, vector<24x40xf32> -> vector<24x40xf32>
    %c0_11 = arith.constant 0 : index
    %c0_12 = arith.constant 0 : index
    %10 = vector.load %arg6[%c0_11, %c0_12] : memref<1x40xf32, #tpu.memory_space<vmem>>, vector<1x40xf32>
    %11 = vector.broadcast %10 : vector<1x40xf32> to vector<24x40xf32>
    %12 = arith.addf %9, %11 : vector<24x40xf32>
    %c0_13 = arith.constant 0 : index
    %c0_14 = arith.constant 0 : index
    %13 = vector.load %arg5[%c0_13, %c0_14] : memref<10x40xf32, #tpu.memory_space<vmem>>, vector<10x40xf32>
    %cst_15 = arith.constant 0.000000e+00 : f32
    %14 = vector.broadcast %cst_15 : f32 to vector<4x10xf32>
    %cst_16 = arith.constant 0.000000e+00 : f32
    %15 = vector.broadcast %cst_16 : f32 to vector<4x10xf32>
    %16 = vector.extract_strided_slice %12 {offsets = [0, 0], sizes = [4, 40], strides = [1, 1]} : vector<24x40xf32> to vector<4x40xf32>
    %cst_17 = arith.constant dense<0.000000e+00> : vector<4x40xf32>
    %17 = tpu.matmul %14, %13, %cst_17 {dimension_numbers = #tpu.dot_dimension_numbers<[1], [0], [0], [1], [0, 0, 1, 1], [], []>} : vector<4x10xf32>, vector<10x40xf32>, vector<4x40xf32> -> vector<4x40xf32>
    %18 = arith.addf %16, %17 : vector<4x40xf32>
    %19 = vector.extract_strided_slice %18 {offsets = [0, 0], sizes = [4, 10], strides = [1, 1]} : vector<4x40xf32> to vector<4x10xf32>
    %20 = arith.negf %19 : vector<4x10xf32>
    %21 = math.exp %20 : vector<4x10xf32>
    %cst_18 = arith.constant 1.000000e+00 : f32
    %22 = vector.broadcast %cst_18 : f32 to vector<4x10xf32>
    %23 = arith.addf %22, %21 : vector<4x10xf32>
    %24 = arith.divf %22, %23 : vector<4x10xf32>
    %25 = vector.extract_strided_slice %18 {offsets = [0, 10], sizes = [4, 10], strides = [1, 1]} : vector<4x40xf32> to vector<4x10xf32>
    %26 = arith.negf %25 : vector<4x10xf32>
    %27 = math.exp %26 : vector<4x10xf32>
    %cst_19 = arith.constant 1.000000e+00 : f32
    %28 = vector.broadcast %cst_19 : f32 to vector<4x10xf32>
    %29 = arith.addf %28, %27 : vector<4x10xf32>
    %30 = arith.divf %28, %29 : vector<4x10xf32>
    %31 = vector.extract_strided_slice %18 {offsets = [0, 20], sizes = [4, 10], strides = [1, 1]} : vector<4x40xf32> to vector<4x10xf32>
    %32 = math.tanh %31 : vector<4x10xf32>
    %33 = vector.extract_strided_slice %18 {offsets = [0, 30], sizes = [4, 10], strides = [1, 1]} : vector<4x40xf32> to vector<4x10xf32>
    %34 = arith.negf %33 : vector<4x10xf32>
    %35 = math.exp %34 : vector<4x10xf32>
    %cst_20 = arith.constant 1.000000e+00 : f32
    %36 = vector.broadcast %cst_20 : f32 to vector<4x10xf32>
    %37 = arith.addf %36, %35 : vector<4x10xf32>
    %38 = arith.divf %36, %37 : vector<4x10xf32>
    %39 = arith.mulf %30, %15 : vector<4x10xf32>
    %40 = arith.mulf %24, %32 : vector<4x10xf32>
    %41 = arith.addf %39, %40 : vector<4x10xf32>
    %42 = math.tanh %41 : vector<4x10xf32>
    %43 = arith.mulf %38, %42 : vector<4x10xf32>
    %44 = vector.extract_strided_slice %12 {offsets = [4, 0], sizes = [4, 40], strides = [1, 1]} : vector<24x40xf32> to vector<4x40xf32>
    %cst_21 = arith.constant dense<0.000000e+00> : vector<4x40xf32>
    %45 = tpu.matmul %43, %13, %cst_21 {dimension_numbers = #tpu.dot_dimension_numbers<[1], [0], [0], [1], [0, 0, 1, 1], [], []>} : vector<4x10xf32>, vector<10x40xf32>, vector<4x40xf32> -> vector<4x40xf32>
    %46 = arith.addf %44, %45 : vector<4x40xf32>
    %47 = vector.extract_strided_slice %46 {offsets = [0, 0], sizes = [4, 10], strides = [1, 1]} : vector<4x40xf32> to vector<4x10xf32>
    %48 = arith.negf %47 : vector<4x10xf32>
    %49 = math.exp %48 : vector<4x10xf32>
    %cst_22 = arith.constant 1.000000e+00 : f32
    %50 = vector.broadcast %cst_22 : f32 to vector<4x10xf32>
    %51 = arith.addf %50, %49 : vector<4x10xf32>
    %52 = arith.divf %50, %51 : vector<4x10xf32>
    %53 = vector.extract_strided_slice %46 {offsets = [0, 10], sizes = [4, 10], strides = [1, 1]} : vector<4x40xf32> to vector<4x10xf32>
    %54 = arith.negf %53 : vector<4x10xf32>
    %55 = math.exp %54 : vector<4x10xf32>
    %cst_23 = arith.constant 1.000000e+00 : f32
    %56 = vector.broadcast %cst_23 : f32 to vector<4x10xf32>
    %57 = arith.addf %56, %55 : vector<4x10xf32>
    %58 = arith.divf %56, %57 : vector<4x10xf32>
    %59 = vector.extract_strided_slice %46 {offsets = [0, 20], sizes = [4, 10], strides = [1, 1]} : vector<4x40xf32> to vector<4x10xf32>
    %60 = math.tanh %59 : vector<4x10xf32>
    %61 = vector.extract_strided_slice %46 {offsets = [0, 30], sizes = [4, 10], strides = [1, 1]} : vector<4x40xf32> to vector<4x10xf32>
    %62 = arith.negf %61 : vector<4x10xf32>
    %63 = math.exp %62 : vector<4x10xf32>
    %cst_24 = arith.constant 1.000000e+00 : f32
    %64 = vector.broadcast %cst_24 : f32 to vector<4x10xf32>
    %65 = arith.addf %64, %63 : vector<4x10xf32>
    %66 = arith.divf %64, %65 : vector<4x10xf32>
    %67 = arith.mulf %58, %41 : vector<4x10xf32>
    %68 = arith.mulf %52, %60 : vector<4x10xf32>
    %69 = arith.addf %67, %68 : vector<4x10xf32>
    %70 = math.tanh %69 : vector<4x10xf32>
    %71 = arith.mulf %66, %70 : vector<4x10xf32>
    %72 = vector.extract_strided_slice %12 {offsets = [8, 0], sizes = [4, 40], strides = [1, 1]} : vector<24x40xf32> to vector<4x40xf32>
    %cst_25 = arith.constant dense<0.000000e+00> : vector<4x40xf32>
    %73 = tpu.matmul %71, %13, %cst_25 {dimension_numbers = #tpu.dot_dimension_numbers<[1], [0], [0], [1], [0, 0, 1, 1], [], []>} : vector<4x10xf32>, vector<10x40xf32>, vector<4x40xf32> -> vector<4x40xf32>
    %74 = arith.addf %72, %73 : vector<4x40xf32>
    %75 = vector.extract_strided_slice %74 {offsets = [0, 0], sizes = [4, 10], strides = [1, 1]} : vector<4x40xf32> to vector<4x10xf32>
    %76 = arith.negf %75 : vector<4x10xf32>
    %77 = math.exp %76 : vector<4x10xf32>
    %cst_26 = arith.constant 1.000000e+00 : f32
    %78 = vector.broadcast %cst_26 : f32 to vector<4x10xf32>
    %79 = arith.addf %78, %77 : vector<4x10xf32>
    %80 = arith.divf %78, %79 : vector<4x10xf32>
    %81 = vector.extract_strided_slice %74 {offsets = [0, 10], sizes = [4, 10], strides = [1, 1]} : vector<4x40xf32> to vector<4x10xf32>
    %82 = arith.negf %81 : vector<4x10xf32>
    %83 = math.exp %82 : vector<4x10xf32>
    %cst_27 = arith.constant 1.000000e+00 : f32
    %84 = vector.broadcast %cst_27 : f32 to vector<4x10xf32>
    %85 = arith.addf %84, %83 : vector<4x10xf32>
    %86 = arith.divf %84, %85 : vector<4x10xf32>
    %87 = vector.extract_strided_slice %74 {offsets = [0, 20], sizes = [4, 10], strides = [1, 1]} : vector<4x40xf32> to vector<4x10xf32>
    %88 = math.tanh %87 : vector<4x10xf32>
    %89 = vector.extract_strided_slice %74 {offsets = [0, 30], sizes = [4, 10], strides = [1, 1]} : vector<4x40xf32> to vector<4x10xf32>
    %90 = arith.negf %89 : vector<4x10xf32>
    %91 = math.exp %90 : vector<4x10xf32>
    %cst_28 = arith.constant 1.000000e+00 : f32
    %92 = vector.broadcast %cst_28 : f32 to vector<4x10xf32>
    %93 = arith.addf %92, %91 : vector<4x10xf32>
    %94 = arith.divf %92, %93 : vector<4x10xf32>
    %95 = arith.mulf %86, %69 : vector<4x10xf32>
    %96 = arith.mulf %80, %88 : vector<4x10xf32>
    %97 = arith.addf %95, %96 : vector<4x10xf32>
    %98 = math.tanh %97 : vector<4x10xf32>
    %99 = arith.mulf %94, %98 : vector<4x10xf32>
    %100 = vector.extract_strided_slice %12 {offsets = [12, 0], sizes = [4, 40], strides = [1, 1]} : vector<24x40xf32> to vector<4x40xf32>
    %cst_29 = arith.constant dense<0.000000e+00> : vector<4x40xf32>
    %101 = tpu.matmul %99, %13, %cst_29 {dimension_numbers = #tpu.dot_dimension_numbers<[1], [0], [0], [1], [0, 0, 1, 1], [], []>} : vector<4x10xf32>, vector<10x40xf32>, vector<4x40xf32> -> vector<4x40xf32>
    %102 = arith.addf %100, %101 : vector<4x40xf32>
    %103 = vector.extract_strided_slice %102 {offsets = [0, 0], sizes = [4, 10], strides = [1, 1]} : vector<4x40xf32> to vector<4x10xf32>
    %104 = arith.negf %103 : vector<4x10xf32>
    %105 = math.exp %104 : vector<4x10xf32>
    %cst_30 = arith.constant 1.000000e+00 : f32
    %106 = vector.broadcast %cst_30 : f32 to vector<4x10xf32>
    %107 = arith.addf %106, %105 : vector<4x10xf32>
    %108 = arith.divf %106, %107 : vector<4x10xf32>
    %109 = vector.extract_strided_slice %102 {offsets = [0, 10], sizes = [4, 10], strides = [1, 1]} : vector<4x40xf32> to vector<4x10xf32>
    %110 = arith.negf %109 : vector<4x10xf32>
    %111 = math.exp %110 : vector<4x10xf32>
    %cst_31 = arith.constant 1.000000e+00 : f32
    %112 = vector.broadcast %cst_31 : f32 to vector<4x10xf32>
    %113 = arith.addf %112, %111 : vector<4x10xf32>
    %114 = arith.divf %112, %113 : vector<4x10xf32>
    %115 = vector.extract_strided_slice %102 {offsets = [0, 20], sizes = [4, 10], strides = [1, 1]} : vector<4x40xf32> to vector<4x10xf32>
    %116 = math.tanh %115 : vector<4x10xf32>
    %117 = vector.extract_strided_slice %102 {offsets = [0, 30], sizes = [4, 10], strides = [1, 1]} : vector<4x40xf32> to vector<4x10xf32>
    %118 = arith.negf %117 : vector<4x10xf32>
    %119 = math.exp %118 : vector<4x10xf32>
    %cst_32 = arith.constant 1.000000e+00 : f32
    %120 = vector.broadcast %cst_32 : f32 to vector<4x10xf32>
    %121 = arith.addf %120, %119 : vector<4x10xf32>
    %122 = arith.divf %120, %121 : vector<4x10xf32>
    %123 = arith.mulf %114, %97 : vector<4x10xf32>
    %124 = arith.mulf %108, %116 : vector<4x10xf32>
    %125 = arith.addf %123, %124 : vector<4x10xf32>
    %126 = math.tanh %125 : vector<4x10xf32>
    %127 = arith.mulf %122, %126 : vector<4x10xf32>
    %128 = vector.extract_strided_slice %12 {offsets = [16, 0], sizes = [4, 40], strides = [1, 1]} : vector<24x40xf32> to vector<4x40xf32>
    %cst_33 = arith.constant dense<0.000000e+00> : vector<4x40xf32>
    %129 = tpu.matmul %127, %13, %cst_33 {dimension_numbers = #tpu.dot_dimension_numbers<[1], [0], [0], [1], [0, 0, 1, 1], [], []>} : vector<4x10xf32>, vector<10x40xf32>, vector<4x40xf32> -> vector<4x40xf32>
    %130 = arith.addf %128, %129 : vector<4x40xf32>
    %131 = vector.extract_strided_slice %130 {offsets = [0, 0], sizes = [4, 10], strides = [1, 1]} : vector<4x40xf32> to vector<4x10xf32>
    %132 = arith.negf %131 : vector<4x10xf32>
    %133 = math.exp %132 : vector<4x10xf32>
    %cst_34 = arith.constant 1.000000e+00 : f32
    %134 = vector.broadcast %cst_34 : f32 to vector<4x10xf32>
    %135 = arith.addf %134, %133 : vector<4x10xf32>
    %136 = arith.divf %134, %135 : vector<4x10xf32>
    %137 = vector.extract_strided_slice %130 {offsets = [0, 10], sizes = [4, 10], strides = [1, 1]} : vector<4x40xf32> to vector<4x10xf32>
    %138 = arith.negf %137 : vector<4x10xf32>
    %139 = math.exp %138 : vector<4x10xf32>
    %cst_35 = arith.constant 1.000000e+00 : f32
    %140 = vector.broadcast %cst_35 : f32 to vector<4x10xf32>
    %141 = arith.addf %140, %139 : vector<4x10xf32>
    %142 = arith.divf %140, %141 : vector<4x10xf32>
    %143 = vector.extract_strided_slice %130 {offsets = [0, 20], sizes = [4, 10], strides = [1, 1]} : vector<4x40xf32> to vector<4x10xf32>
    %144 = math.tanh %143 : vector<4x10xf32>
    %145 = vector.extract_strided_slice %130 {offsets = [0, 30], sizes = [4, 10], strides = [1, 1]} : vector<4x40xf32> to vector<4x10xf32>
    %146 = arith.negf %145 : vector<4x10xf32>
    %147 = math.exp %146 : vector<4x10xf32>
    %cst_36 = arith.constant 1.000000e+00 : f32
    %148 = vector.broadcast %cst_36 : f32 to vector<4x10xf32>
    %149 = arith.addf %148, %147 : vector<4x10xf32>
    %150 = arith.divf %148, %149 : vector<4x10xf32>
    %151 = arith.mulf %142, %125 : vector<4x10xf32>
    %152 = arith.mulf %136, %144 : vector<4x10xf32>
    %153 = arith.addf %151, %152 : vector<4x10xf32>
    %154 = math.tanh %153 : vector<4x10xf32>
    %155 = arith.mulf %150, %154 : vector<4x10xf32>
    %156 = vector.extract_strided_slice %12 {offsets = [20, 0], sizes = [4, 40], strides = [1, 1]} : vector<24x40xf32> to vector<4x40xf32>
    %cst_37 = arith.constant dense<0.000000e+00> : vector<4x40xf32>
    %157 = tpu.matmul %155, %13, %cst_37 {dimension_numbers = #tpu.dot_dimension_numbers<[1], [0], [0], [1], [0, 0, 1, 1], [], []>} : vector<4x10xf32>, vector<10x40xf32>, vector<4x40xf32> -> vector<4x40xf32>
    %158 = arith.addf %156, %157 : vector<4x40xf32>
    %159 = vector.extract_strided_slice %158 {offsets = [0, 0], sizes = [4, 10], strides = [1, 1]} : vector<4x40xf32> to vector<4x10xf32>
    %160 = arith.negf %159 : vector<4x10xf32>
    %161 = math.exp %160 : vector<4x10xf32>
    %cst_38 = arith.constant 1.000000e+00 : f32
    %162 = vector.broadcast %cst_38 : f32 to vector<4x10xf32>
    %163 = arith.addf %162, %161 : vector<4x10xf32>
    %164 = arith.divf %162, %163 : vector<4x10xf32>
    %165 = vector.extract_strided_slice %158 {offsets = [0, 10], sizes = [4, 10], strides = [1, 1]} : vector<4x40xf32> to vector<4x10xf32>
    %166 = arith.negf %165 : vector<4x10xf32>
    %167 = math.exp %166 : vector<4x10xf32>
    %cst_39 = arith.constant 1.000000e+00 : f32
    %168 = vector.broadcast %cst_39 : f32 to vector<4x10xf32>
    %169 = arith.addf %168, %167 : vector<4x10xf32>
    %170 = arith.divf %168, %169 : vector<4x10xf32>
    %171 = vector.extract_strided_slice %158 {offsets = [0, 20], sizes = [4, 10], strides = [1, 1]} : vector<4x40xf32> to vector<4x10xf32>
    %172 = math.tanh %171 : vector<4x10xf32>
    %173 = vector.extract_strided_slice %158 {offsets = [0, 30], sizes = [4, 10], strides = [1, 1]} : vector<4x40xf32> to vector<4x10xf32>
    %174 = arith.negf %173 : vector<4x10xf32>
    %175 = math.exp %174 : vector<4x10xf32>
    %cst_40 = arith.constant 1.000000e+00 : f32
    %176 = vector.broadcast %cst_40 : f32 to vector<4x10xf32>
    %177 = arith.addf %176, %175 : vector<4x10xf32>
    %178 = arith.divf %176, %177 : vector<4x10xf32>
    %179 = arith.mulf %170, %153 : vector<4x10xf32>
    %180 = arith.mulf %164, %172 : vector<4x10xf32>
    %181 = arith.addf %179, %180 : vector<4x10xf32>
    %182 = math.tanh %181 : vector<4x10xf32>
    %183 = arith.mulf %178, %182 : vector<4x10xf32>
    %c0_41 = arith.constant 0 : index
    %c0_42 = arith.constant 0 : index
    %184 = vector.load %arg7[%c0_41, %c0_42] : memref<10x2xf32, #tpu.memory_space<vmem>>, vector<10x2xf32>
    %cst_43 = arith.constant dense<0.000000e+00> : vector<4x2xf32>
    %185 = tpu.matmul %183, %184, %cst_43 {dimension_numbers = #tpu.dot_dimension_numbers<[1], [0], [0], [1], [0, 0, 1, 1], [], []>} : vector<4x10xf32>, vector<10x2xf32>, vector<4x2xf32> -> vector<4x2xf32>
    %c0_44 = arith.constant 0 : index
    %c0_45 = arith.constant 0 : index
    %186 = vector.load %arg8[%c0_44, %c0_45] : memref<1x2xf32, #tpu.memory_space<vmem>>, vector<1x2xf32>
    %187 = vector.broadcast %186 : vector<1x2xf32> to vector<4x2xf32>
    %188 = arith.addf %185, %187 : vector<4x2xf32>
    %c0_46 = arith.constant 0 : index
    %c0_47 = arith.constant 0 : index
    %189 = vector.load %arg9[%c0_46, %c0_47] : memref<4x2xf32, #tpu.memory_space<vmem>>, vector<4x2xf32>
    tpu.vector_store %arg9[%c0_46, %c0_47], %188 {strides = array<i32>} : memref<4x2xf32, #tpu.memory_space<vmem>>, vector<4x2xf32>,
    return
  }
}

</mosaic_0001>

<llo_original>
// kernel: conv_lstm_forward.1
$region0: #{conv_lstm_forward.1}
  #allocation0 [shape = 'u32[]', space=smem, size = 0x4, offset = 0x4, fixed_abs, tag = 'smem constant byte address 0x4 - core index']
  #allocation1 [shape = 'u32[72,128]{1,0:T(1,128)}', space=vmem, size = 0x9000, scoped, tag = 'internal scratch']
  %s0 = inlined_call_operand.vmem [shape: bf16[200,125], index: 0, kind: input, shape index: {}]
  %s1 = inlined_call_operand.vmem [shape: bf16[125,40], index: 1, kind: input, shape index: {}]
  %s2 = inlined_call_operand.vmem [shape: f32[1,40], index: 2, kind: input, shape index: {}]
  %s3 = inlined_call_operand.vmem [shape: f32[24,200], index: 3, kind: input, shape index: {}]
  %s4 = inlined_call_operand.vmem [shape: f32[40,40], index: 4, kind: input, shape index: {}]
  %s5 = inlined_call_operand.vmem [shape: f32[10,40], index: 5, kind: input, shape index: {}]
  %s6 = inlined_call_operand.vmem [shape: f32[1,40], index: 6, kind: input, shape index: {}]
  %s7 = inlined_call_operand.vmem [shape: f32[10,2], index: 7, kind: input, shape index: {}]
  %s8 = inlined_call_operand.vmem [shape: f32[1,2], index: 8, kind: input, shape index: {}]
  %s9 = inlined_call_operand.vmem [shape: f32[4,2], index: 9, kind: output, shape index: {}]
  %s10 = sld [smem:[#allocation0]]
  $region46: #{conv_lstm_forward.1} parent=0
    _
  %s12 = ssub.s32 1, %s10
  %s13 = scalar_select 0, %s12, %s10
  // Predicated region
  $region2: #{conv_lstm_forward.1} parent=0 // pred_check
    _
  $region3: #{conv_lstm_forward.1} parent=0 // pred_check_branch
    %15 = sbr.rel (0) target = $region5
  $region4: #{conv_lstm_forward.1} parent=0 // pred_region
    _
  $region5: #{conv_lstm_forward.1} parent=0 // pred_fallthru
    _
  // Predicated region
  $region6: #{conv_lstm_forward.1} parent=0 // pred_check
    _
  $region7: #{conv_lstm_forward.1} parent=0 // pred_check_branch
    %17 = sbr.rel (0) target = $region9
  $region8: #{conv_lstm_forward.1} parent=0 // pred_region
    _
  $region9: #{conv_lstm_forward.1} parent=0 // pred_fallthru
    _
  // Predicated region
  $region10: #{conv_lstm_forward.1} parent=0 // pred_check
    _
  $region11: #{conv_lstm_forward.1} parent=0 // pred_check_branch
    %19 = sbr.rel (0) target = $region13
  $region12: #{conv_lstm_forward.1} parent=0 // pred_region
    _
  $region13: #{conv_lstm_forward.1} parent=0 // pred_fallthru
    _
  // Predicated region
  $region14: #{conv_lstm_forward.1} parent=0 // pred_check
    _
  $region15: #{conv_lstm_forward.1} parent=0 // pred_check_branch
    %21 = sbr.rel (0) target = $region17
  $region16: #{conv_lstm_forward.1} parent=0 // pred_region
    _
  $region17: #{conv_lstm_forward.1} parent=0 // pred_fallthru
    _
  // Predicated region
  $region18: #{conv_lstm_forward.1} parent=0 // pred_check
    _
  $region19: #{conv_lstm_forward.1} parent=0 // pred_check_branch
    %23 = sbr.rel (0) target = $region21
  $region20: #{conv_lstm_forward.1} parent=0 // pred_region
    _
  $region21: #{conv_lstm_forward.1} parent=0 // pred_fallthru
    _
  // Predicated region
  $region22: #{conv_lstm_forward.1} parent=0 // pred_check
    _
  $region23: #{conv_lstm_forward.1} parent=0 // pred_check_branch
    %25 = sbr.rel (0) target = $region25
  $region24: #{conv_lstm_forward.1} parent=0 // pred_region
    _
  $region25: #{conv_lstm_forward.1} parent=0 // pred_fallthru
    _
  // Predicated region
  $region26: #{conv_lstm_forward.1} parent=0 // pred_check
    _
  $region27: #{conv_lstm_forward.1} parent=0 // pred_check_branch
    %27 = sbr.rel (0) target = $region29
  $region28: #{conv_lstm_forward.1} parent=0 // pred_region
    _
  $region29: #{conv_lstm_forward.1} parent=0 // pred_fallthru
    _
  // Predicated region
  $region30: #{conv_lstm_forward.1} parent=0 // pred_check
    _
  $region31: #{conv_lstm_forward.1} parent=0 // pred_check_branch
    %29 = sbr.rel (0) target = $region33
  $region32: #{conv_lstm_forward.1} parent=0 // pred_region
    _
  $region33: #{conv_lstm_forward.1} parent=0 // pred_fallthru
    _
  // Predicated region
  $region34: #{conv_lstm_forward.1} parent=0 // pred_check
    _
  $region35: #{conv_lstm_forward.1} parent=0 // pred_check_branch
    %31 = sbr.rel (0) target = $region37
  $region36: #{conv_lstm_forward.1} parent=0 // pred_region
    _
  $region37: #{conv_lstm_forward.1} parent=0 // pred_fallthru
    _
  %v32 = vld [vmem:[%s0] sm:$0xf]
  %v33 = vld [vmem:[%s0 + $0x4] sm:$0xf]
  %v34 = vld [vmem:[%s0 + $0x8] sm:$0xf]
  %v35 = vld [vmem:[%s0 + $0xc] sm:$0xf]
  %v36 = vld [vmem:[%s0 + $0x10] sm:$0xf]
  %v37 = vld [vmem:[%s0 + $0x14] sm:$0xf]
  %v38 = vld [vmem:[%s0 + $0x18] sm:$0xf]
  %v39 = vld [vmem:[%s0 + $0x1c] sm:$0xf]
  %v40 = vld [vmem:[%s0 + $0x20] sm:$0xf]
  %v41 = vld [vmem:[%s0 + $0x24] sm:$0xf]
  %v42 = vld [vmem:[%s0 + $0x28] sm:$0xf]
  %v43 = vld [vmem:[%s0 + $0x2c] sm:$0xf]
  %v44 = vld [vmem:[%s0 + $0x30] sm:$0xf]
  %v45 = vld [vmem:[%s0 + $0x34] sm:$0xf]
  %v46 = vld [vmem:[%s0 + $0x38] sm:$0xf]
  %v47 = vld [vmem:[%s0 + $0x3c] sm:$0xf]
  %v48 = vld [vmem:[%s0 + $0x40] sm:$0xf]
  %v49 = vld [vmem:[%s0 + $0x44] sm:$0xf]
  %v50 = vld [vmem:[%s0 + $0x48] sm:$0xf]
  %v51 = vld [vmem:[%s0 + $0x4c] sm:$0xf]
  %v52 = vld [vmem:[%s0 + $0x50] sm:$0xf]
  %v53 = vld [vmem:[%s0 + $0x54] sm:$0xf]
  %v54 = vld [vmem:[%s0 + $0x58] sm:$0xf]
  %v55 = vld [vmem:[%s0 + $0x5c] sm:$0xf]
  %v56 = vld [vmem:[%s0 + $0x60] sm:$0xf]
  %v57 = vld [vmem:[%s1] sm:$0xf]
  %v58 = vld [vmem:[%s1 + $0x4] sm:$0xf]
  %v59 = vld [vmem:[%s1 + $0x8] sm:$0xf]
  %v60 = vld [vmem:[%s1 + $0xc] sm:$0xf]
  %v61 = vld [vmem:[%s1 + $0x10] sm:$0xf]
  %v62 = vld [vmem:[%s1 + $0x14] sm:$0xf]
  %v63 = vld [vmem:[%s1 + $0x18] sm:$0xf]
  %v64 = vld [vmem:[%s1 + $0x1c] sm:$0xf]
  %v65 = vld [vmem:[%s1 + $0x20] sm:$0xf]
  %v66 = vld [vmem:[%s1 + $0x24] sm:$0xf]
  %v67 = vld [vmem:[%s1 + $0x28] sm:$0xf]
  %v68 = vld [vmem:[%s1 + $0x2c] sm:$0xf]
  %v69 = vld [vmem:[%s1 + $0x30] sm:$0xf]
  %v70 = vld [vmem:[%s1 + $0x34] sm:$0xf]
  %v71 = vld [vmem:[%s1 + $0x38] sm:$0xf]
  %v72 = vld [vmem:[%s1 + $0x3c] sm:$0x7]
  %v73 = vld [vmem:[%s2] sm:$0x1]
  %v75 = vperm.slane %v73, 0
  %v102 = vunpack.c.l.b16 %v32
  %v103 = vunpack.c.l.b16 %v33
  %v104 = vunpack.c.l.b16 %v34
  %v105 = vunpack.c.l.b16 %v35
  %v106 = vunpack.c.l.b16 %v36
  %v107 = vunpack.c.l.b16 %v37
  %v108 = vunpack.c.l.b16 %v38
  %v109 = vunpack.c.l.b16 %v39
  %v110 = vunpack.c.l.b16 %v40
  %v111 = vunpack.c.l.b16 %v41
  %v112 = vunpack.c.l.b16 %v42
  %v113 = vunpack.c.l.b16 %v43
  %v114 = vunpack.c.l.b16 %v44
  %v115 = vunpack.c.l.b16 %v45
  %v116 = vunpack.c.l.b16 %v46
  %v117 = vunpack.c.l.b16 %v47
  %v118 = vunpack.c.l.b16 %v48
  %v119 = vunpack.c.l.b16 %v49
  %v120 = vunpack.c.l.b16 %v50
  %v121 = vunpack.c.l.b16 %v51
  %v122 = vunpack.c.l.b16 %v52
  %v123 = vunpack.c.l.b16 %v53
  %v124 = vunpack.c.l.b16 %v54
  %v125 = vunpack.c.l.b16 %v55
  %v126 = vunpack.c.l.b16 %v56
  %v127 = vpack.c.b16 %v103, %v102
  %v128 = vpack.c.b16 %v105, %v104
  %v129 = vpack.c.b16 %v107, %v106
  %v130 = vpack.c.b16 %v109, %v108
  %v131 = vpack.c.b16 %v111, %v110
  %v132 = vpack.c.b16 %v113, %v112
  %v133 = vpack.c.b16 %v115, %v114
  %v134 = vpack.c.b16 %v117, %v116
  %v135 = vpack.c.b16 %v119, %v118
  %v136 = vpack.c.b16 %v121, %v120
  %v137 = vpack.c.b16 %v123, %v122
  %v138 = vpack.c.b16 %v125, %v124
  %v139 = vpack.c.b16 %v126, %v126
  %v156 = vunpack.c.l.b16 %v57
  %v157 = vunpack.c.l.b16 %v58
  %v158 = vunpack.c.l.b16 %v59
  %v159 = vunpack.c.l.b16 %v60
  %v160 = vunpack.c.l.b16 %v61
  %v161 = vunpack.c.l.b16 %v62
  %v162 = vunpack.c.l.b16 %v63
  %v163 = vunpack.c.l.b16 %v64
  %v164 = vunpack.c.l.b16 %v65
  %v165 = vunpack.c.l.b16 %v66
  %v166 = vunpack.c.l.b16 %v67
  %v167 = vunpack.c.l.b16 %v68
  %v168 = vunpack.c.l.b16 %v69
  %v169 = vunpack.c.l.b16 %v70
  %v170 = vunpack.c.l.b16 %v71
  %v171 = vunpack.c.l.b16 %v72
  %v172 = vpack.c.b16 %v157, %v156
  %v173 = vpack.c.b16 %v159, %v158
  %v174 = vpack.c.b16 %v161, %v160
  %v175 = vpack.c.b16 %v163, %v162
  %v176 = vpack.c.b16 %v165, %v164
  %v177 = vpack.c.b16 %v167, %v166
  %v178 = vpack.c.b16 %v169, %v168
  %v179 = vpack.c.b16 %v171, %v170
  %vm187 = vcmask 1022976
  %v189 = vsel %vm187, %v127, 0
  %v192 = vsel %vm187, %v128, 0
  %v195 = vsel %vm187, %v129, 0
  %v198 = vsel %vm187, %v130, 0
  %v201 = vsel %vm187, %v131, 0
  %v204 = vsel %vm187, %v132, 0
  %v207 = vsel %vm187, %v133, 0
  %v210 = vsel %vm187, %v134, 0
  %v213 = vsel %vm187, %v135, 0
  %v216 = vsel %vm187, %v136, 0
  %v219 = vsel %vm187, %v137, 0
  %v222 = vsel %vm187, %v138, 0
  %v225 = vsel %vm187, %v139, 0
  %vm227 = vcmask 1045504
  %vm228 = vcmask 1046528
  %v229 = vsel %vm227, 4294967295, 65535
  %v230 = vsel %vm228, %v229, 0
  %v232 = vand.u32 %v179, %v230
  %234 = vmatpush.bf16.msra.mxu0 %v232
  %235 = vmatpush.bf16.msra.mxu0 %v178
  %236 = vmatpush.bf16.msra.mxu0 %v177
  %237 = vmatpush.bf16.msra.mxu0 %v176
  %238 = vmatpush.bf16.msra.mxu0 %v175
  %239 = vmatpush.bf16.msra.mxu0 %v174
  %240 = vmatpush.bf16.msra.mxu0 %v173
  %241 = vmatpush.bf16.msra.mxu0 %v172
  %242 = vmatmul.bf16.gmra.mxu0 %v189
  %v243 = vpop.f32.mrf.mxu0
  %v244 = vadd.f32 %v75, %v243
  %v245 = vpop.f32.mrf.mxu0
  %v246 = vadd.f32 %v75, %v245
  %247 = vmatmul.bf16.gmra.mxu0 %v192
  %v248 = vpop.f32.mrf.mxu0
  %v249 = vadd.f32 %v75, %v248
  %v250 = vpop.f32.mrf.mxu0
  %v251 = vadd.f32 %v75, %v250
  %252 = vmatmul.bf16.gmra.mxu0 %v195
  %v253 = vpop.f32.mrf.mxu0
  %v254 = vadd.f32 %v75, %v253
  %v255 = vpop.f32.mrf.mxu0
  %v256 = vadd.f32 %v75, %v255
  %257 = vmatmul.bf16.gmra.mxu0 %v198
  %v258 = vpop.f32.mrf.mxu0
  %v259 = vadd.f32 %v75, %v258
  %v260 = vpop.f32.mrf.mxu0
  %v261 = vadd.f32 %v75, %v260
  %262 = vmatmul.bf16.gmra.mxu0 %v201
  %v263 = vpop.f32.mrf.mxu0
  %v264 = vadd.f32 %v75, %v263
  %v265 = vpop.f32.mrf.mxu0
  %v266 = vadd.f32 %v75, %v265
  %267 = vmatmul.bf16.gmra.mxu0 %v204
  %v268 = vpop.f32.mrf.mxu0
  %v269 = vadd.f32 %v75, %v268
  %v270 = vpop.f32.mrf.mxu0
  %v271 = vadd.f32 %v75, %v270
  %272 = vmatmul.bf16.gmra.mxu0 %v207
  %v273 = vpop.f32.mrf.mxu0
  %v274 = vadd.f32 %v75, %v273
  %v275 = vpop.f32.mrf.mxu0
  %v276 = vadd.f32 %v75, %v275
  %277 = vmatmul.bf16.gmra.mxu0 %v210
  %v278 = vpop.f32.mrf.mxu0
  %v279 = vadd.f32 %v75, %v278
  %v280 = vpop.f32.mrf.mxu0
  %v281 = vadd.f32 %v75, %v280
  %282 = vmatmul.bf16.gmra.mxu0 %v213
  %v283 = vpop.f32.mrf.mxu0
  %v284 = vadd.f32 %v75, %v283
  %v285 = vpop.f32.mrf.mxu0
  %v286 = vadd.f32 %v75, %v285
  %287 = vmatmul.bf16.gmra.mxu0 %v216
  %v288 = vpop.f32.mrf.mxu0
  %v289 = vadd.f32 %v75, %v288
  %v290 = vpop.f32.mrf.mxu0
  %v291 = vadd.f32 %v75, %v290
  %292 = vmatmul.bf16.gmra.mxu0 %v219
  %v293 = vpop.f32.mrf.mxu0
  %v294 = vadd.f32 %v75, %v293
  %v295 = vpop.f32.mrf.mxu0
  %v296 = vadd.f32 %v75, %v295
  %297 = vmatmul.bf16.gmra.mxu0 %v222
  %v298 = vpop.f32.mrf.mxu0
  %v299 = vadd.f32 %v75, %v298
  %v300 = vpop.f32.mrf.mxu0
  %v301 = vadd.f32 %v75, %v300
  %302 = vmatmul.bf16.gmra.mxu0 %v225
  %v303 = vpop.f32.mrf.mxu0
  %v304 = vadd.f32 %v75, %v303
  %v305 = vpop.f32.mrf.mxu0
  %306 = vdwg.mxu0
  %v307 = vld [vmem:[%s3] sm:$0xff]
  %v308 = vld [vmem:[%s3 + $0x8] sm:$0xff]
  %v309 = vld [vmem:[%s3 + $0x10] sm:$0xff]
  %v310 = vld [vmem:[%s3 + $0x18] sm:$0xff]
  %v311 = vld [vmem:[%s3 + $0x20] sm:$0xff]
  %v312 = vld [vmem:[%s3 + $0x28] sm:$0xff]
  %vm313 = vcmask 588800
  %v315 = vsel %vm313, %v308, 0
  %v318 = vsel %vm313, %v310, 0
  %v321 = vsel %vm313, %v312, 0
  %323 = vmatpush.msra.mxu0 %v281
  %324 = vmatpush.msra.mxu0 %v279
  %325 = vmatpush.msra.mxu0 %v276
  %326 = vmatpush.msra.mxu0 %v274
  %327 = vmatpush.msra.mxu0 %v271
  %328 = vmatpush.msra.mxu0 %v269
  %329 = vmatpush.msra.mxu0 %v266
  %330 = vmatpush.msra.mxu0 %v264
  %331 = vmatpush.msra.mxu0 %v261
  %332 = vmatpush.msra.mxu0 %v259
  %333 = vmatpush.msra.mxu0 %v256
  %334 = vmatpush.msra.mxu0 %v254
  %335 = vmatpush.msra.mxu0 %v251
  %336 = vmatpush.msra.mxu0 %v249
  %337 = vmatpush.msra.mxu0 %v246
  %338 = vmatpush.msra.mxu0 %v244
  %339 = vmatmul.f32.gmra.mxu0 %v307
  %v340 = vpop.f32.mrf.mxu0
  %v341 = vadd.f32 0.0, %v340
  %342 = vmatmul.f32.gmra.mxu0 %v309
  %v343 = vpop.f32.mrf.mxu0
  %v344 = vadd.f32 0.0, %v343
  %345 = vmatmul.f32.gmra.mxu0 %v311
  %v346 = vpop.f32.mrf.mxu0
  %v347 = vadd.f32 0.0, %v346
  %348 = vdwg.mxu0
  %349 = vmatpush.msra.mxu0 0.0
  %350 = vmatpush.msra.mxu0 0.0
  %351 = vmatpush.msra.mxu0 0.0
  %352 = vmatpush.msra.mxu0 0.0
  %353 = vmatpush.msra.mxu0 0.0
  %354 = vmatpush.msra.mxu0 0.0
  %355 = vmatpush.msra.mxu0 0.0
  %356 = vmatpush.msra.mxu0 %v304
  %357 = vmatpush.msra.mxu0 %v301
  %358 = vmatpush.msra.mxu0 %v299
  %359 = vmatpush.msra.mxu0 %v296
  %360 = vmatpush.msra.mxu0 %v294
  %361 = vmatpush.msra.mxu0 %v291
  %362 = vmatpush.msra.mxu0 %v289
  %363 = vmatpush.msra.mxu0 %v286
  %364 = vmatpush.msra.mxu0 %v284
  %365 = vmatmul.f32.gmra.mxu0 %v315
  %v366 = vpop.f32.mrf.mxu0
  %v367 = vadd.f32 %v341, %v366
  %368 = vmatmul.f32.gmra.mxu0 %v318
  %v369 = vpop.f32.mrf.mxu0
  %v370 = vadd.f32 %v344, %v369
  %371 = vmatmul.f32.gmra.mxu0 %v321
  %v372 = vpop.f32.mrf.mxu0
  %v373 = vadd.f32 %v347, %v372
  %374 = vdwg.mxu0
  %v375 = vld [vmem:[%s4] sm:$0xff]
  %v376 = vld [vmem:[%s4 + $0x8] sm:$0xff]
  %v377 = vld [vmem:[%s4 + $0x10] sm:$0xff]
  %v378 = vld [vmem:[%s4 + $0x18] sm:$0xff]
  %v379 = vld [vmem:[%s4 + $0x20] sm:$0xff]
  %v380 = vld [vmem:[%s6] sm:$0x1]
  %v382 = vperm.slane %v380, 0
  %vm384 = vcmask 326656
  %v386 = vsel %vm384, %v367, 0
  %v389 = vsel %vm384, %v370, 0
  %v392 = vsel %vm384, %v373, 0
  %394 = vmatpush.msra.mxu0 0.0
  %395 = vmatpush.msra.mxu0 0.0
  %396 = vmatpush.msra.mxu0 0.0
  %397 = vmatpush.msra.mxu0 0.0
  %398 = vmatpush.msra.mxu0 0.0
  %399 = vmatpush.msra.mxu0 0.0
  %400 = vmatpush.msra.mxu0 0.0
  %401 = vmatpush.msra.mxu0 0.0
  %402 = vmatpush.msra.mxu0 0.0
  %403 = vmatpush.msra.mxu0 0.0
  %404 = vmatpush.msra.mxu0 0.0
  %405 = vmatpush.msra.mxu0 %v379
  %406 = vmatpush.msra.mxu0 %v378
  %407 = vmatpush.msra.mxu0 %v377
  %408 = vmatpush.msra.mxu0 %v376
  %409 = vmatpush.msra.mxu0 %v375
  %410 = vmatmul.f32.gmra.mxu0 %v386
  %v411 = vpop.f32.mrf.mxu0
  %v412 = vadd.f32 %v382, %v411
  %413 = vmatmul.f32.gmra.mxu0 %v389
  %v414 = vpop.f32.mrf.mxu0
  %v415 = vadd.f32 %v382, %v414
  %416 = vmatmul.f32.gmra.mxu0 %v392
  %v417 = vpop.f32.mrf.mxu0
  %v418 = vadd.f32 %v382, %v417
  %419 = vdwg.mxu0
  %v420 = vld [vmem:[%s5] sm:$0xff]
  %v421 = vld [vmem:[%s5 + $0x8] sm:$0x3]
  %vm422 = vcmask 80896
  %v424 = vsel %vm422, 0.0, 0
  %vm426 = vcmask 1041408
  %v428 = vsel %vm426, %v421, 0
  %430 = vmatpush.msra.mxu0 0.0
  %431 = vmatpush.msra.mxu0 0.0
  %432 = vmatpush.msra.mxu0 0.0
  %433 = vmatpush.msra.mxu0 0.0
  %434 = vmatpush.msra.mxu0 0.0
  %435 = vmatpush.msra.mxu0 0.0
  %436 = vmatpush.msra.mxu0 0.0
  %437 = vmatpush.msra.mxu0 0.0
  %438 = vmatpush.msra.mxu0 0.0
  %439 = vmatpush.msra.mxu0 0.0
  %440 = vmatpush.msra.mxu0 0.0
  %441 = vmatpush.msra.mxu0 0.0
  %442 = vmatpush.msra.mxu0 0.0
  %443 = vmatpush.msra.mxu0 0.0
  %444 = vmatpush.msra.mxu0 %v428
  %445 = vmatpush.msra.mxu0 %v420
  %446 = vmatmul.f32.gmra.mxu0 %v424
  %v447 = vpop.f32.mrf.mxu0
  %v448 = vadd.f32 0.0, %v447
  %449 = vdwg.mxu0
  %v450 = vadd.f32 %v412, %v448
  %v451 = vxor.u32 %v450, 2147483648
  %v452 = vmul.f32 %v451, 1.442695
  %v453 = vpow.pop %v452
  %v454 = vadd.f32 %v453, 1.0
  %v455 = vrcp.pop %v454
  %v456 = vmul.f32 %v454, %v455
  %v457 = vsub.f32 1.0, %v456
  %v458 = vmul.f32 %v455, %v457
  %v459 = vadd.f32 %v455, %v458
  %vm460 = vweird.f32 %v454
  %vm461 = vweird.f32 %v455
  %vm462 = vmor %vm460, %vm461
  %v463 = vsel %vm462, %v455, %v459
  %v464 = vand.u32 2147483647, %v454
  %vm465 = vcmp.eq.f32.partialorder %v464, 8.507059e+37
  %v466 = vand.u32 %v454, 2147483648
  %v467 = vor.u32 1.1754944e-38, %v466
  %v468 = vsel %vm465, %v467, %v463
  %v469 = vmul.f32 1.0, %v468
  %v470 = vtanh.pop %v450
  %v471 = vmul.f32 %v469, 0.0
  %473 = vrot.lane.b32.xlu0 %v470, 108
  %v474 = vpop.permute.xlu0 %473
  %v476 = vmul.f32 %v469, %v474
  %478 = vrot.lane.b32.xlu0 %v476, 10
  %v479 = vpop.permute.xlu0 %478
  %v481 = vadd.f32 %v471, %v479
  %v482 = vtanh.pop %v481
  %484 = vrot.lane.b32.xlu0 %v482, 20
  %v485 = vpop.permute.xlu0 %484
  %v487 = vmul.f32 %v469, %v485
  %489 = vrot.lane.b32.xlu0 %v487, 98
  %v490 = vpop.permute.xlu0 %489
  %v491 = vsel %vm422, %v490, 0
  %493 = vmatpush.msra.mxu0 0.0
  %494 = vmatpush.msra.mxu0 0.0
  %495 = vmatpush.msra.mxu0 0.0
  %496 = vmatpush.msra.mxu0 0.0
  %497 = vmatpush.msra.mxu0 0.0
  %498 = vmatpush.msra.mxu0 0.0
  %499 = vmatpush.msra.mxu0 0.0
  %500 = vmatpush.msra.mxu0 0.0
  %501 = vmatpush.msra.mxu0 0.0
  %502 = vmatpush.msra.mxu0 0.0
  %503 = vmatpush.msra.mxu0 0.0
  %504 = vmatpush.msra.mxu0 0.0
  %505 = vmatpush.msra.mxu0 0.0
  %506 = vmatpush.msra.mxu0 0.0
  %507 = vmatpush.msra.mxu0 %v428
  %508 = vmatpush.msra.mxu0 %v420
  %509 = vmatmul.f32.gmra.mxu0 %v491
  %v510 = vpop.f32.mrf.mxu0
  %v511 = vadd.f32 0.0, %v510
  %512 = vdwg.mxu0
  %v514 = vrot.slane %v511, 4
  %v516 = vadd.f32 %v412, %v514
  %v517 = vxor.u32 %v516, 2147483648
  %v518 = vmul.f32 %v517, 1.442695
  %v519 = vpow.pop %v518
  %v520 = vadd.f32 %v519, 1.0
  %v521 = vrcp.pop %v520
  %v522 = vmul.f32 %v520, %v521
  %v523 = vsub.f32 1.0, %v522
  %v524 = vmul.f32 %v521, %v523
  %v525 = vadd.f32 %v521, %v524
  %vm526 = vweird.f32 %v520
  %vm527 = vweird.f32 %v521
  %vm528 = vmor %vm526, %vm527
  %v529 = vsel %vm528, %v521, %v525
  %v530 = vand.u32 2147483647, %v520
  %vm531 = vcmp.eq.f32.partialorder %v530, 8.507059e+37
  %v532 = vand.u32 %v520, 2147483648
  %v533 = vor.u32 1.1754944e-38, %v532
  %v534 = vsel %vm531, %v533, %v529
  %v535 = vmul.f32 1.0, %v534
  %v536 = vtanh.pop %v516
  %v538 = vrot.slane %v481, 4
  %v540 = vmul.f32 %v535, %v538
  %542 = vrot.lane.b32.xlu0 %v536, 108
  %v543 = vpop.permute.xlu0 %542
  %v545 = vmul.f32 %v535, %v543
  %547 = vrot.lane.b32.xlu0 %v545, 10
  %v548 = vpop.permute.xlu0 %547
  %v550 = vadd.f32 %v540, %v548
  %v551 = vtanh.pop %v550
  %553 = vrot.lane.b32.xlu0 %v551, 20
  %v554 = vpop.permute.xlu0 %553
  %v556 = vmul.f32 %v535, %v554
  %v558 = vrot.slane %v556, 4
  %559 = vrot.lane.b32.xlu0 %v558, 98
  %v560 = vpop.permute.xlu0 %559
  %v561 = vsel %vm422, %v560, 0
  %563 = vmatpush.msra.mxu0 0.0
  %564 = vmatpush.msra.mxu0 0.0
  %565 = vmatpush.msra.mxu0 0.0
  %566 = vmatpush.msra.mxu0 0.0
  %567 = vmatpush.msra.mxu0 0.0
  %568 = vmatpush.msra.mxu0 0.0
  %569 = vmatpush.msra.mxu0 0.0
  %570 = vmatpush.msra.mxu0 0.0
  %571 = vmatpush.msra.mxu0 0.0
  %572 = vmatpush.msra.mxu0 0.0
  %573 = vmatpush.msra.mxu0 0.0
  %574 = vmatpush.msra.mxu0 0.0
  %575 = vmatpush.msra.mxu0 0.0
  %576 = vmatpush.msra.mxu0 0.0
  %577 = vmatpush.msra.mxu0 %v428
  %578 = vmatpush.msra.mxu0 %v420
  %579 = vmatmul.f32.gmra.mxu0 %v561
  %v580 = vpop.f32.mrf.mxu0
  %v581 = vadd.f32 0.0, %v580
  %582 = vdwg.mxu0
  %v583 = vadd.f32 %v415, %v581
  %v584 = vxor.u32 %v583, 2147483648
  %v585 = vmul.f32 %v584, 1.442695
  %v586 = vpow.pop %v585
  %v587 = vadd.f32 %v586, 1.0
  %v588 = vrcp.pop %v587
  %v589 = vmul.f32 %v587, %v588
  %v590 = vsub.f32 1.0, %v589
  %v591 = vmul.f32 %v588, %v590
  %v592 = vadd.f32 %v588, %v591
  %vm593 = vweird.f32 %v587
  %vm594 = vweird.f32 %v588
  %vm595 = vmor %vm593, %vm594
  %v596 = vsel %vm595, %v588, %v592
  %v597 = vand.u32 2147483647, %v587
  %vm598 = vcmp.eq.f32.partialorder %v597, 8.507059e+37
  %v599 = vand.u32 %v587, 2147483648
  %v600 = vor.u32 1.1754944e-38, %v599
  %v601 = vsel %vm598, %v600, %v596
  %v602 = vmul.f32 1.0, %v601
  %v603 = vtanh.pop %v583
  %v605 = vrot.slane %v550, 4
  %v607 = vmul.f32 %v602, %v605
  %609 = vrot.lane.b32.xlu0 %v603, 108
  %v610 = vpop.permute.xlu0 %609
  %v612 = vmul.f32 %v602, %v610
  %614 = vrot.lane.b32.xlu0 %v612, 10
  %v615 = vpop.permute.xlu0 %614
  %v617 = vadd.f32 %v607, %v615
  %v618 = vtanh.pop %v617
  %620 = vrot.lane.b32.xlu0 %v618, 20
  %v621 = vpop.permute.xlu0 %620
  %v623 = vmul.f32 %v602, %v621
  %625 = vrot.lane.b32.xlu0 %v623, 98
  %v626 = vpop.permute.xlu0 %625
  %v627 = vsel %vm422, %v626, 0
  %629 = vmatpush.msra.mxu0 0.0
  %630 = vmatpush.msra.mxu0 0.0
  %631 = vmatpush.msra.mxu0 0.0
  %632 = vmatpush.msra.mxu0 0.0
  %633 = vmatpush.msra.mxu0 0.0
  %634 = vmatpush.msra.mxu0 0.0
  %635 = vmatpush.msra.mxu0 0.0
  %636 = vmatpush.msra.mxu0 0.0
  %637 = vmatpush.msra.mxu0 0.0
  %638 = vmatpush.msra.mxu0 0.0
  %639 = vmatpush.msra.mxu0 0.0
  %640 = vmatpush.msra.mxu0 0.0
  %641 = vmatpush.msra.mxu0 0.0
  %642 = vmatpush.msra.mxu0 0.0
  %643 = vmatpush.msra.mxu0 %v428
  %644 = vmatpush.msra.mxu0 %v420
  %645 = vmatmul.f32.gmra.mxu0 %v627
  %v646 = vpop.f32.mrf.mxu0
  %v647 = vadd.f32 0.0, %v646
  %648 = vdwg.mxu0
  %v650 = vrot.slane %v647, 4
  %v652 = vadd.f32 %v415, %v650
  %v653 = vxor.u32 %v652, 2147483648
  %v654 = vmul.f32 %v653, 1.442695
  %v655 = vpow.pop %v654
  %v656 = vadd.f32 %v655, 1.0
  %v657 = vrcp.pop %v656
  %v658 = vmul.f32 %v656, %v657
  %v659 = vsub.f32 1.0, %v658
  %v660 = vmul.f32 %v657, %v659
  %v661 = vadd.f32 %v657, %v660
  %vm662 = vweird.f32 %v656
  %vm663 = vweird.f32 %v657
  %vm664 = vmor %vm662, %vm663
  %v665 = vsel %vm664, %v657, %v661
  %v666 = vand.u32 2147483647, %v656
  %vm667 = vcmp.eq.f32.partialorder %v666, 8.507059e+37
  %v668 = vand.u32 %v656, 2147483648
  %v669 = vor.u32 1.1754944e-38, %v668
  %v670 = vsel %vm667, %v669, %v665
  %v671 = vmul.f32 1.0, %v670
  %v672 = vtanh.pop %v652
  %v674 = vrot.slane %v617, 4
  %v676 = vmul.f32 %v671, %v674
  %678 = vrot.lane.b32.xlu0 %v672, 108
  %v679 = vpop.permute.xlu0 %678
  %v681 = vmul.f32 %v671, %v679
  %683 = vrot.lane.b32.xlu0 %v681, 10
  %v684 = vpop.permute.xlu0 %683
  %v686 = vadd.f32 %v676, %v684
  %v687 = vtanh.pop %v686
  %689 = vrot.lane.b32.xlu0 %v687, 20
  %v690 = vpop.permute.xlu0 %689
  %v692 = vmul.f32 %v671, %v690
  %v694 = vrot.slane %v692, 4
  %695 = vrot.lane.b32.xlu0 %v694, 98
  %v696 = vpop.permute.xlu0 %695
  %v697 = vsel %vm422, %v696, 0
  %699 = vmatpush.msra.mxu0 0.0
  %700 = vmatpush.msra.mxu0 0.0
  %701 = vmatpush.msra.mxu0 0.0
  %702 = vmatpush.msra.mxu0 0.0
  %703 = vmatpush.msra.mxu0 0.0
  %704 = vmatpush.msra.mxu0 0.0
  %705 = vmatpush.msra.mxu0 0.0
  %706 = vmatpush.msra.mxu0 0.0
  %707 = vmatpush.msra.mxu0 0.0
  %708 = vmatpush.msra.mxu0 0.0
  %709 = vmatpush.msra.mxu0 0.0
  %710 = vmatpush.msra.mxu0 0.0
  %711 = vmatpush.msra.mxu0 0.0
  %712 = vmatpush.msra.mxu0 0.0
  %713 = vmatpush.msra.mxu0 %v428
  %714 = vmatpush.msra.mxu0 %v420
  %715 = vmatmul.f32.gmra.mxu0 %v697
  %v716 = vpop.f32.mrf.mxu0
  %v717 = vadd.f32 0.0, %v716
  %718 = vdwg.mxu0
  %v719 = vadd.f32 %v418, %v717
  %v720 = vxor.u32 %v719, 2147483648
  %v721 = vmul.f32 %v720, 1.442695
  %v722 = vpow.pop %v721
  %v723 = vadd.f32 %v722, 1.0
  %v724 = vrcp.pop %v723
  %v725 = vmul.f32 %v723, %v724
  %v726 = vsub.f32 1.0, %v725
  %v727 = vmul.f32 %v724, %v726
  %v728 = vadd.f32 %v724, %v727
  %vm729 = vweird.f32 %v723
  %vm730 = vweird.f32 %v724
  %vm731 = vmor %vm729, %vm730
  %v732 = vsel %vm731, %v724, %v728
  %v733 = vand.u32 2147483647, %v723
  %vm734 = vcmp.eq.f32.partialorder %v733, 8.507059e+37
  %v735 = vand.u32 %v723, 2147483648
  %v736 = vor.u32 1.1754944e-38, %v735
  %v737 = vsel %vm734, %v736, %v732
  %v738 = vmul.f32 1.0, %v737
  %v739 = vtanh.pop %v719
  %v741 = vrot.slane %v686, 4
  %v743 = vmul.f32 %v738, %v741
  %745 = vrot.lane.b32.xlu0 %v739, 108
  %v746 = vpop.permute.xlu0 %745
  %v748 = vmul.f32 %v738, %v746
  %750 = vrot.lane.b32.xlu0 %v748, 10
  %v751 = vpop.permute.xlu0 %750
  %v753 = vadd.f32 %v743, %v751
  %v754 = vtanh.pop %v753
  %756 = vrot.lane.b32.xlu0 %v754, 20
  %v757 = vpop.permute.xlu0 %756
  %v759 = vmul.f32 %v738, %v757
  %761 = vrot.lane.b32.xlu0 %v759, 98
  %v762 = vpop.permute.xlu0 %761
  %v763 = vsel %vm422, %v762, 0
  %765 = vmatpush.msra.mxu0 0.0
  %766 = vmatpush.msra.mxu0 0.0
  %767 = vmatpush.msra.mxu0 0.0
  %768 = vmatpush.msra.mxu0 0.0
  %769 = vmatpush.msra.mxu0 0.0
  %770 = vmatpush.msra.mxu0 0.0
  %771 = vmatpush.msra.mxu0 0.0
  %772 = vmatpush.msra.mxu0 0.0
  %773 = vmatpush.msra.mxu0 0.0
  %774 = vmatpush.msra.mxu0 0.0
  %775 = vmatpush.msra.mxu0 0.0
  %776 = vmatpush.msra.mxu0 0.0
  %777 = vmatpush.msra.mxu0 0.0
  %778 = vmatpush.msra.mxu0 0.0
  %779 = vmatpush.msra.mxu0 %v428
  %780 = vmatpush.msra.mxu0 %v420
  %781 = vmatmul.f32.gmra.mxu0 %v763
  %v782 = vpop.f32.mrf.mxu0
  %v783 = vadd.f32 0.0, %v782
  %784 = vdwg.mxu0
  %v786 = vrot.slane %v783, 4
  %v788 = vadd.f32 %v418, %v786
  %v789 = vxor.u32 %v788, 2147483648
  %v790 = vmul.f32 %v789, 1.442695
  %v791 = vpow.pop %v790
  %v792 = vadd.f32 %v791, 1.0
  %v793 = vrcp.pop %v792
  %v794 = vmul.f32 %v792, %v793
  %v795 = vsub.f32 1.0, %v794
  %v796 = vmul.f32 %v793, %v795
  %v797 = vadd.f32 %v793, %v796
  %vm798 = vweird.f32 %v792
  %vm799 = vweird.f32 %v793
  %vm800 = vmor %vm798, %vm799
  %v801 = vsel %vm800, %v793, %v797
  %v802 = vand.u32 2147483647, %v792
  %vm803 = vcmp.eq.f32.partialorder %v802, 8.507059e+37
  %v804 = vand.u32 %v792, 2147483648
  %v805 = vor.u32 1.1754944e-38, %v804
  %v806 = vsel %vm803, %v805, %v801
  %v807 = vmul.f32 1.0, %v806
  %v808 = vtanh.pop %v788
  %v810 = vrot.slane %v753, 4
  %v812 = vmul.f32 %v807, %v810
  %814 = vrot.lane.b32.xlu0 %v808, 108
  %v815 = vpop.permute.xlu0 %814
  %v817 = vmul.f32 %v807, %v815
  %819 = vrot.lane.b32.xlu0 %v817, 10
  %v820 = vpop.permute.xlu0 %819
  %v822 = vadd.f32 %v812, %v820
  %v823 = vtanh.pop %v822
  %825 = vrot.lane.b32.xlu0 %v823, 20
  %v826 = vpop.permute.xlu0 %825
  %v828 = vmul.f32 %v807, %v826
  %v829 = vld [vmem:[%s7] sm:$0xff]
  %v830 = vld [vmem:[%s7 + $0x8] sm:$0x3]
  %v831 = vld [vmem:[%s8] sm:$0x1]
  %v833 = vperm.slane %v831, 0
  %v836 = vrot.slane %v828, 4
  %837 = vrot.lane.b32.xlu0 %v836, 98
  %v838 = vpop.permute.xlu0 %837
  %v839 = vsel %vm422, %v838, 0
  %v842 = vsel %vm426, %v830, 0
  %844 = vmatpush.msra.mxu0 0.0
  %845 = vmatpush.msra.mxu0 0.0
  %846 = vmatpush.msra.mxu0 0.0
  %847 = vmatpush.msra.mxu0 0.0
  %848 = vmatpush.msra.mxu0 0.0
  %849 = vmatpush.msra.mxu0 0.0
  %850 = vmatpush.msra.mxu0 0.0
  %851 = vmatpush.msra.mxu0 0.0
  %852 = vmatpush.msra.mxu0 0.0
  %853 = vmatpush.msra.mxu0 0.0
  %854 = vmatpush.msra.mxu0 0.0
  %855 = vmatpush.msra.mxu0 0.0
  %856 = vmatpush.msra.mxu0 0.0
  %857 = vmatpush.msra.mxu0 0.0
  %858 = vmatpush.msra.mxu0 %v842
  %859 = vmatpush.msra.mxu0 %v829
  %860 = vmatmul.f32.gmra.mxu0 %v839
  %v861 = vpop.f32.mrf.mxu0
  %v862 = vadd.f32 %v833, %v861
  %863 = vdwg.mxu0
  %vm864 = vcmask 11264
  %865 = vst.msk [vmem:[%s9] sm:$0xf] %vm864, %v862
  // Predicated region
  $region38: #{conv_lstm_forward.1} parent=0 // pred_check
    _
  $region39: #{conv_lstm_forward.1} parent=0 // pred_check_branch
    %867 = sbr.rel (0) target = $region41
  $region40: #{conv_lstm_forward.1} parent=0 // pred_region
    _
  $region41: #{conv_lstm_forward.1} parent=0 // pred_fallthru
    _
  // Predicated region
  $region42: #{conv_lstm_forward.1} parent=0 // pred_check
    _
  $region43: #{conv_lstm_forward.1} parent=0 // pred_check_branch
    %869 = sbr.rel (0) target = $region45
  $region44: #{conv_lstm_forward.1} parent=0 // pred_region
    _
  $region45: #{conv_lstm_forward.1} parent=0 // pred_fallthru
    _

</llo_original>
